<compile_context>
chip_gen: v5e
topology: v5e:2x2
jax: 0.10.0
libtpu: 0.0.40
codegen_flags: <defaults>
</compile_context>

<pallas_src>
import jax
import jax.numpy as jnp
from jax.experimental import pallas as pl
from jax.experimental.pallas import tpu as pltpu

BN_EPS = 1e-5        # nn.BatchNorm1d default
NORM_EPS = 1e-12     # F.normalize default
MATMUL_DTYPE = jnp.bfloat16   # MXU-native operand dtype on v5e/v6e/v7x


def _vmem():
    return pl.BlockSpec(memory_space=pltpu.MemorySpace.VMEM)


# ----------------------------- fused kernel --------------------------------

def byol_fused_kernel(x_ref, wb_ref, bb_ref,
                      w1p_ref, b1p_ref, gp_ref, betap_ref, w2p_ref, b2p_ref,
                      w1q_ref, b1q_ref, gq_ref, betaq_ref, w2q_ref, b2q_ref,
                      loss_ref):
    two_b = x_ref.shape[0]          # both views stacked along rows
    nb = two_b // 2                 # per-view batch size
    inv_nb = 1.0 / nb

    # View-membership masks, built once (hoisted; reused by both MLPs).
    row = jax.lax.broadcasted_iota(jnp.int32, (two_b, 1), 0)
    m_one = (row < nb).astype(jnp.float32)     # rows belonging to view one
    m_two = 1.0 - m_one                        # rows belonging to view two

    def dot32(a, b):
        # MXU matmul: bf16 operands, f32 accumulation.
        return jnp.dot(a.astype(MATMUL_DTYPE), b.astype(MATMUL_DTYPE),
                       preferred_element_type=jnp.float32)

    def batchnorm_per_view(h, gamma, beta):
        # nn.BatchNorm1d training mode (biased variance), computed separately per
        # view so stacking the views does not alter PyTorch's per-call stats.
        # All statistics in f32 (VPU/EUP path, no bf16 vector math).
        mean1 = jnp.sum(h * m_one, axis=0, keepdims=True) * inv_nb
        mean2 = jnp.sum(h * m_two, axis=0, keepdims=True) * inv_nb
        d = h - (m_one * mean1 + m_two * mean2)
        var1 = jnp.sum(d * d * m_one, axis=0, keepdims=True) * inv_nb
        var2 = jnp.sum(d * d * m_two, axis=0, keepdims=True) * inv_nb
        var = m_one * var1 + m_two * var2
        return d * jax.lax.rsqrt(var + BN_EPS) * gamma + beta

    def mlp(a, w1, b1, gamma, beta, w2, b2):
        # MLP from the reference: Linear -> BatchNorm1d -> ReLU -> Linear
        h = dot32(a, w1[...]) + b1[...]
        h = batchnorm_per_view(h, gamma[...], beta[...])
        h = jnp.maximum(h, 0.0)
        return dot32(h, w2[...]) + b2[...]

    # Backbone hidden layer (forward hook at layer=-2 of the synthetic net),
    # both views in one matmul.
    rep = dot32(x_ref[...], wb_ref[...]) + bb_ref[...]

    # Online projector + online predictor.
    proj = mlp(rep, w1p_ref, b1p_ref, gp_ref, betap_ref, w2p_ref, b2p_ref)
    pred = mlp(proj, w1q_ref, b1q_ref, gq_ref, betaq_ref, w2q_ref, b2q_ref)

    # target_encoder == deepcopy of online encoder at init -> identical
    # projections; torch.no_grad()/.detach() semantics -> stop_gradient.
    tgt = jax.lax.stop_gradient(proj)

    def l2_normalize(v):   # F.normalize(p=2, dim=-1, eps=1e-12), f32
        n = jnp.sqrt(jnp.sum(v * v, axis=-1, keepdims=True))
        return v / jnp.maximum(n, NORM_EPS)

    p = l2_normalize(pred)
    t = l2_normalize(tgt)

    # Cosine similarities pred[i] . target[j] for all row pairs (tiny MXU matmul),
    # keep only cross-view pairs (j = i +/- nb): this is exactly
    # loss_one (view-1 pred vs view-2 target) + loss_two (view-2 pred vs view-1 target).
    sim = jax.lax.dot_general(p, t, (((1,), (1,)), ((), ())),
                              preferred_element_type=jnp.float32)      # (2B, 2B)
    ri = jax.lax.broadcasted_iota(jnp.int32, (two_b, two_b), 0)
    ci = jax.lax.broadcasted_iota(jnp.int32, (two_b, two_b), 1)
    cross = jnp.logical_or(ri - ci == nb, ci - ri == nb).astype(jnp.float32)
    s = jnp.sum(jnp.sum(sim * cross, axis=1, keepdims=True),
                axis=0, keepdims=True)                                 # (1, 1)

    # (loss_one + loss_two).mean() with loss = 2 - 2 * cos_sim per sample.
    loss_ref[...] = 4.0 - (2.0 * inv_nb) * s


# ----------------------------- wrapper --------------------------------------

@jax.jit
def byol_forward(params, image_one, image_two):
    (wb, bb), projector, predictor = params
    B = image_one.shape[0]

    # flatten(t): NCHW -> (B, C*H*W) row-major, then stack the two views so
    # every weight is DMA'd into VMEM once and each layer is one matmul on 2B rows.
    x = jnp.concatenate(
        [image_one.reshape(B, -1), image_two.reshape(B, -1)], axis=0
    ).astype(MATMUL_DTYPE)

    loss = pl.pallas_call(
        byol_fused_kernel,
        out_shape=jax.ShapeDtypeStruct((1, 1), jnp.float32),
        in_specs=[_vmem()] * 15,
        out_specs=_vmem(),
    )(x, wb, bb, *projector, *predictor)
    return loss[0, 0]


# ----------------------------- model setup ----------------------------------

def init_params(key, in_dim, feat_dim, proj_size, proj_hidden,
                w_dtype=MATMUL_DTYPE):
    ks = jax.random.split(key, 5)
    s = 0.02

    def _mlp_params(k1, k2, din, hid, dout):
        return (
            (jax.random.normal(k1, (din, hid), jnp.float32) * s).astype(w_dtype),  # W1
            jnp.zeros((1, hid), jnp.float32),                                      # b1
            jnp.ones((1, hid), jnp.float32),                                       # BN gamma
            jnp.zeros((1, hid), jnp.float32),                                      # BN beta
            (jax.random.normal(k2, (hid, dout), jnp.float32) * s).astype(w_dtype), # W2
            jnp.zeros((1, dout), jnp.float32),                                     # b2
        )

    backbone = (
        (jax.random.normal(ks[0], (in_dim, feat_dim), jnp.float32) * s).astype(w_dtype),
        jnp.zeros((1, feat_dim), jnp.float32),
    )
    projector = _mlp_params(ks[1], ks[2], feat_dim, proj_hidden, proj_size)
    predictor = _mlp_params(ks[3], ks[4], proj_size, proj_hidden, proj_size)
    return backbone, projector, predictor


if __name__ == "__main__":
    # matches BYOL.__init__'s probe: forward(torch.randn(2, 3, image_size, image_size), ...)
    B, C, H, W = 2, 3, 16, 16
    FEAT = 32            # backbone hidden width (layer -2 output)
    PROJ_SIZE = 32       # projection_size (small)
    PROJ_HIDDEN = 64     # projection_hidden_size (small)

    key = jax.random.PRNGKey(0)
    kp, k1, k2 = jax.random.split(key, 3)
    params = init_params(kp, C * H * W, FEAT, PROJ_SIZE, PROJ_HIDDEN)

    image_one = jax.random.normal(k1, (B, C, H, W), jnp.float32)
    image_two = jax.random.normal(k2, (B, C, H, W), jnp.float32)

    loss = byol_forward(params, image_one, image_two)
    jax.block_until_ready(loss)
    assert loss.shape == () and bool(jnp.isfinite(loss))
    print("KERNEL_OK")
</pallas_src>

<mosaic_0001>
module attributes {stable_mosaic.version = 11 : i64} {
  func.func @byol_fused_kernel(%arg0: memref<4x768xbf16, #tpu.memory_space<vmem>>, %arg1: memref<768x32xbf16, #tpu.memory_space<vmem>>, %arg2: memref<1x32xf32, #tpu.memory_space<vmem>>, %arg3: memref<32x64xbf16, #tpu.memory_space<vmem>>, %arg4: memref<1x64xf32, #tpu.memory_space<vmem>>, %arg5: memref<1x64xf32, #tpu.memory_space<vmem>>, %arg6: memref<1x64xf32, #tpu.memory_space<vmem>>, %arg7: memref<64x32xbf16, #tpu.memory_space<vmem>>, %arg8: memref<1x32xf32, #tpu.memory_space<vmem>>, %arg9: memref<32x64xbf16, #tpu.memory_space<vmem>>, %arg10: memref<1x64xf32, #tpu.memory_space<vmem>>, %arg11: memref<1x64xf32, #tpu.memory_space<vmem>>, %arg12: memref<1x64xf32, #tpu.memory_space<vmem>>, %arg13: memref<64x32xbf16, #tpu.memory_space<vmem>>, %arg14: memref<1x32xf32, #tpu.memory_space<vmem>>, %arg15: memref<1x1xf32, #tpu.memory_space<vmem>>) attributes {dimension_semantics = [], scalar_prefetch = 0 : i64, scratch_operands = 0 : i64, tpu.core_type = #tpu.core_type<tc>} {
    %0 = tpu.iota {dimensions = array<i32: 0>} : vector<4x1xi32>
    %c2_i32 = arith.constant 2 : i32
    %1 = vector.broadcast %c2_i32 : i32 to vector<4x1xi32>
    %2 = arith.cmpi slt, %0, %1 : vector<4x1xi32>
    %3 = arith.extui %2 : vector<4x1xi1> to vector<4x1xi32>
    %4 = arith.sitofp %3 : vector<4x1xi32> to vector<4x1xf32>
    %cst = arith.constant 1.000000e+00 : f32
    %5 = vector.broadcast %cst : f32 to vector<4x1xf32>
    %6 = arith.subf %5, %4 : vector<4x1xf32>
    %c0 = arith.constant 0 : index
    %c0_0 = arith.constant 0 : index
    %7 = vector.load %arg0[%c0, %c0_0] : memref<4x768xbf16, #tpu.memory_space<vmem>>, vector<4x768xbf16>
    %c0_1 = arith.constant 0 : index
    %c0_2 = arith.constant 0 : index
    %8 = vector.load %arg1[%c0_1, %c0_2] : memref<768x32xbf16, #tpu.memory_space<vmem>>, vector<768x32xbf16>
    %cst_3 = arith.constant dense<0.000000e+00> : vector<4x32xf32>
    %9 = tpu.matmul %7, %8, %cst_3 {dimension_numbers = #tpu.dot_dimension_numbers<[1], [0], [0], [1], [0, 0, 1, 1], [], []>} : vector<4x768xbf16>, vector<768x32xbf16>, vector<4x32xf32> -> vector<4x32xf32>
    %c0_4 = arith.constant 0 : index
    %c0_5 = arith.constant 0 : index
    %10 = vector.load %arg2[%c0_4, %c0_5] : memref<1x32xf32, #tpu.memory_space<vmem>>, vector<1x32xf32>
    %11 = vector.broadcast %10 : vector<1x32xf32> to vector<4x32xf32>
    %12 = arith.addf %9, %11 : vector<4x32xf32>
    %c0_6 = arith.constant 0 : index
    %c0_7 = arith.constant 0 : index
    %13 = vector.load %arg3[%c0_6, %c0_7] : memref<32x64xbf16, #tpu.memory_space<vmem>>, vector<32x64xbf16>
    %14 = arith.truncf %12 : vector<4x32xf32> to vector<4x32xbf16>
    %cst_8 = arith.constant dense<0.000000e+00> : vector<4x64xf32>
    %15 = tpu.matmul %14, %13, %cst_8 {dimension_numbers = #tpu.dot_dimension_numbers<[1], [0], [0], [1], [0, 0, 1, 1], [], []>} : vector<4x32xbf16>, vector<32x64xbf16>, vector<4x64xf32> -> vector<4x64xf32>
    %c0_9 = arith.constant 0 : index
    %c0_10 = arith.constant 0 : index
    %16 = vector.load %arg4[%c0_9, %c0_10] : memref<1x64xf32, #tpu.memory_space<vmem>>, vector<1x64xf32>
    %17 = vector.broadcast %16 : vector<1x64xf32> to vector<4x64xf32>
    %18 = arith.addf %15, %17 : vector<4x64xf32>
    %c0_11 = arith.constant 0 : index
    %c0_12 = arith.constant 0 : index
    %19 = vector.load %arg5[%c0_11, %c0_12] : memref<1x64xf32, #tpu.memory_space<vmem>>, vector<1x64xf32>
    %c0_13 = arith.constant 0 : index
    %c0_14 = arith.constant 0 : index
    %20 = vector.load %arg6[%c0_13, %c0_14] : memref<1x64xf32, #tpu.memory_space<vmem>>, vector<1x64xf32>
    %21 = vector.broadcast %4 : vector<4x1xf32> to vector<4x64xf32>
    %22 = arith.mulf %18, %21 : vector<4x64xf32>
    %cst_15 = arith.constant dense<0.000000e+00> : vector<64xf32>
    %23 = vector.multi_reduction <add>, %22, %cst_15 [0] : vector<4x64xf32> to vector<64xf32>
    %24 = vector.shape_cast %23 : vector<64xf32> to vector<1x64xf32>
    %cst_16 = arith.constant 5.000000e-01 : f32
    %25 = vector.broadcast %cst_16 : f32 to vector<1x64xf32>
    %26 = arith.mulf %24, %25 : vector<1x64xf32>
    %27 = vector.broadcast %6 : vector<4x1xf32> to vector<4x64xf32>
    %28 = arith.mulf %18, %27 : vector<4x64xf32>
    %cst_17 = arith.constant dense<0.000000e+00> : vector<64xf32>
    %29 = vector.multi_reduction <add>, %28, %cst_17 [0] : vector<4x64xf32> to vector<64xf32>
    %30 = vector.shape_cast %29 : vector<64xf32> to vector<1x64xf32>
    %cst_18 = arith.constant 5.000000e-01 : f32
    %31 = vector.broadcast %cst_18 : f32 to vector<1x64xf32>
    %32 = arith.mulf %30, %31 : vector<1x64xf32>
    %33 = vector.broadcast %4 : vector<4x1xf32> to vector<4x64xf32>
    %34 = vector.broadcast %26 : vector<1x64xf32> to vector<4x64xf32>
    %35 = arith.mulf %33, %34 : vector<4x64xf32>
    %36 = vector.broadcast %6 : vector<4x1xf32> to vector<4x64xf32>
    %37 = vector.broadcast %32 : vector<1x64xf32> to vector<4x64xf32>
    %38 = arith.mulf %36, %37 : vector<4x64xf32>
    %39 = arith.addf %35, %38 : vector<4x64xf32>
    %40 = arith.subf %18, %39 : vector<4x64xf32>
    %41 = arith.mulf %40, %40 : vector<4x64xf32>
    %42 = vector.broadcast %4 : vector<4x1xf32> to vector<4x64xf32>
    %43 = arith.mulf %41, %42 : vector<4x64xf32>
    %cst_19 = arith.constant dense<0.000000e+00> : vector<64xf32>
    %44 = vector.multi_reduction <add>, %43, %cst_19 [0] : vector<4x64xf32> to vector<64xf32>
    %45 = vector.shape_cast %44 : vector<64xf32> to vector<1x64xf32>
    %cst_20 = arith.constant 5.000000e-01 : f32
    %46 = vector.broadcast %cst_20 : f32 to vector<1x64xf32>
    %47 = arith.mulf %45, %46 : vector<1x64xf32>
    %48 = arith.mulf %40, %40 : vector<4x64xf32>
    %49 = vector.broadcast %6 : vector<4x1xf32> to vector<4x64xf32>
    %50 = arith.mulf %48, %49 : vector<4x64xf32>
    %cst_21 = arith.constant dense<0.000000e+00> : vector<64xf32>
    %51 = vector.multi_reduction <add>, %50, %cst_21 [0] : vector<4x64xf32> to vector<64xf32>
    %52 = vector.shape_cast %51 : vector<64xf32> to vector<1x64xf32>
    %cst_22 = arith.constant 5.000000e-01 : f32
    %53 = vector.broadcast %cst_22 : f32 to vector<1x64xf32>
    %54 = arith.mulf %52, %53 : vector<1x64xf32>
    %55 = vector.broadcast %4 : vector<4x1xf32> to vector<4x64xf32>
    %56 = vector.broadcast %47 : vector<1x64xf32> to vector<4x64xf32>
    %57 = arith.mulf %55, %56 : vector<4x64xf32>
    %58 = vector.broadcast %6 : vector<4x1xf32> to vector<4x64xf32>
    %59 = vector.broadcast %54 : vector<1x64xf32> to vector<4x64xf32>
    %60 = arith.mulf %58, %59 : vector<4x64xf32>
    %61 = arith.addf %57, %60 : vector<4x64xf32>
    %cst_23 = arith.constant 9.99999974E-6 : f32
    %62 = vector.broadcast %cst_23 : f32 to vector<4x64xf32>
    %63 = arith.addf %61, %62 : vector<4x64xf32>
    %64 = math.rsqrt %63 : vector<4x64xf32>
    %65 = arith.mulf %40, %64 : vector<4x64xf32>
    %66 = vector.broadcast %19 : vector<1x64xf32> to vector<4x64xf32>
    %67 = arith.mulf %65, %66 : vector<4x64xf32>
    %68 = vector.broadcast %20 : vector<1x64xf32> to vector<4x64xf32>
    %69 = arith.addf %67, %68 : vector<4x64xf32>
    %cst_24 = arith.constant 0.000000e+00 : f32
    %70 = vector.broadcast %cst_24 : f32 to vector<4x64xf32>
    %71 = arith.maximumf %69, %70 : vector<4x64xf32>
    %c0_25 = arith.constant 0 : index
    %c0_26 = arith.constant 0 : index
    %72 = vector.load %arg7[%c0_25, %c0_26] : memref<64x32xbf16, #tpu.memory_space<vmem>>, vector<64x32xbf16>
    %73 = arith.truncf %71 : vector<4x64xf32> to vector<4x64xbf16>
    %cst_27 = arith.constant dense<0.000000e+00> : vector<4x32xf32>
    %74 = tpu.matmul %73, %72, %cst_27 {dimension_numbers = #tpu.dot_dimension_numbers<[1], [0], [0], [1], [0, 0, 1, 1], [], []>} : vector<4x64xbf16>, vector<64x32xbf16>, vector<4x32xf32> -> vector<4x32xf32>
    %c0_28 = arith.constant 0 : index
    %c0_29 = arith.constant 0 : index
    %75 = vector.load %arg8[%c0_28, %c0_29] : memref<1x32xf32, #tpu.memory_space<vmem>>, vector<1x32xf32>
    %76 = vector.broadcast %75 : vector<1x32xf32> to vector<4x32xf32>
    %77 = arith.addf %74, %76 : vector<4x32xf32>
    %c0_30 = arith.constant 0 : index
    %c0_31 = arith.constant 0 : index
    %78 = vector.load %arg9[%c0_30, %c0_31] : memref<32x64xbf16, #tpu.memory_space<vmem>>, vector<32x64xbf16>
    %79 = arith.truncf %77 : vector<4x32xf32> to vector<4x32xbf16>
    %cst_32 = arith.constant dense<0.000000e+00> : vector<4x64xf32>
    %80 = tpu.matmul %79, %78, %cst_32 {dimension_numbers = #tpu.dot_dimension_numbers<[1], [0], [0], [1], [0, 0, 1, 1], [], []>} : vector<4x32xbf16>, vector<32x64xbf16>, vector<4x64xf32> -> vector<4x64xf32>
    %c0_33 = arith.constant 0 : index
    %c0_34 = arith.constant 0 : index
    %81 = vector.load %arg10[%c0_33, %c0_34] : memref<1x64xf32, #tpu.memory_space<vmem>>, vector<1x64xf32>
    %82 = vector.broadcast %81 : vector<1x64xf32> to vector<4x64xf32>
    %83 = arith.addf %80, %82 : vector<4x64xf32>
    %c0_35 = arith.constant 0 : index
    %c0_36 = arith.constant 0 : index
    %84 = vector.load %arg11[%c0_35, %c0_36] : memref<1x64xf32, #tpu.memory_space<vmem>>, vector<1x64xf32>
    %c0_37 = arith.constant 0 : index
    %c0_38 = arith.constant 0 : index
    %85 = vector.load %arg12[%c0_37, %c0_38] : memref<1x64xf32, #tpu.memory_space<vmem>>, vector<1x64xf32>
    %86 = vector.broadcast %4 : vector<4x1xf32> to vector<4x64xf32>
    %87 = arith.mulf %83, %86 : vector<4x64xf32>
    %cst_39 = arith.constant dense<0.000000e+00> : vector<64xf32>
    %88 = vector.multi_reduction <add>, %87, %cst_39 [0] : vector<4x64xf32> to vector<64xf32>
    %89 = vector.shape_cast %88 : vector<64xf32> to vector<1x64xf32>
    %cst_40 = arith.constant 5.000000e-01 : f32
    %90 = vector.broadcast %cst_40 : f32 to vector<1x64xf32>
    %91 = arith.mulf %89, %90 : vector<1x64xf32>
    %92 = vector.broadcast %6 : vector<4x1xf32> to vector<4x64xf32>
    %93 = arith.mulf %83, %92 : vector<4x64xf32>
    %cst_41 = arith.constant dense<0.000000e+00> : vector<64xf32>
    %94 = vector.multi_reduction <add>, %93, %cst_41 [0] : vector<4x64xf32> to vector<64xf32>
    %95 = vector.shape_cast %94 : vector<64xf32> to vector<1x64xf32>
    %cst_42 = arith.constant 5.000000e-01 : f32
    %96 = vector.broadcast %cst_42 : f32 to vector<1x64xf32>
    %97 = arith.mulf %95, %96 : vector<1x64xf32>
    %98 = vector.broadcast %4 : vector<4x1xf32> to vector<4x64xf32>
    %99 = vector.broadcast %91 : vector<1x64xf32> to vector<4x64xf32>
    %100 = arith.mulf %98, %99 : vector<4x64xf32>
    %101 = vector.broadcast %6 : vector<4x1xf32> to vector<4x64xf32>
    %102 = vector.broadcast %97 : vector<1x64xf32> to vector<4x64xf32>
    %103 = arith.mulf %101, %102 : vector<4x64xf32>
    %104 = arith.addf %100, %103 : vector<4x64xf32>
    %105 = arith.subf %83, %104 : vector<4x64xf32>
    %106 = arith.mulf %105, %105 : vector<4x64xf32>
    %107 = vector.broadcast %4 : vector<4x1xf32> to vector<4x64xf32>
    %108 = arith.mulf %106, %107 : vector<4x64xf32>
    %cst_43 = arith.constant dense<0.000000e+00> : vector<64xf32>
    %109 = vector.multi_reduction <add>, %108, %cst_43 [0] : vector<4x64xf32> to vector<64xf32>
    %110 = vector.shape_cast %109 : vector<64xf32> to vector<1x64xf32>
    %cst_44 = arith.constant 5.000000e-01 : f32
    %111 = vector.broadcast %cst_44 : f32 to vector<1x64xf32>
    %112 = arith.mulf %110, %111 : vector<1x64xf32>
    %113 = arith.mulf %105, %105 : vector<4x64xf32>
    %114 = vector.broadcast %6 : vector<4x1xf32> to vector<4x64xf32>
    %115 = arith.mulf %113, %114 : vector<4x64xf32>
    %cst_45 = arith.constant dense<0.000000e+00> : vector<64xf32>
    %116 = vector.multi_reduction <add>, %115, %cst_45 [0] : vector<4x64xf32> to vector<64xf32>
    %117 = vector.shape_cast %116 : vector<64xf32> to vector<1x64xf32>
    %cst_46 = arith.constant 5.000000e-01 : f32
    %118 = vector.broadcast %cst_46 : f32 to vector<1x64xf32>
    %119 = arith.mulf %117, %118 : vector<1x64xf32>
    %120 = vector.broadcast %4 : vector<4x1xf32> to vector<4x64xf32>
    %121 = vector.broadcast %112 : vector<1x64xf32> to vector<4x64xf32>
    %122 = arith.mulf %120, %121 : vector<4x64xf32>
    %123 = vector.broadcast %6 : vector<4x1xf32> to vector<4x64xf32>
    %124 = vector.broadcast %119 : vector<1x64xf32> to vector<4x64xf32>
    %125 = arith.mulf %123, %124 : vector<4x64xf32>
    %126 = arith.addf %122, %125 : vector<4x64xf32>
    %cst_47 = arith.constant 9.99999974E-6 : f32
    %127 = vector.broadcast %cst_47 : f32 to vector<4x64xf32>
    %128 = arith.addf %126, %127 : vector<4x64xf32>
    %129 = math.rsqrt %128 : vector<4x64xf32>
    %130 = arith.mulf %105, %129 : vector<4x64xf32>
    %131 = vector.broadcast %84 : vector<1x64xf32> to vector<4x64xf32>
    %132 = arith.mulf %130, %131 : vector<4x64xf32>
    %133 = vector.broadcast %85 : vector<1x64xf32> to vector<4x64xf32>
    %134 = arith.addf %132, %133 : vector<4x64xf32>
    %cst_48 = arith.constant 0.000000e+00 : f32
    %135 = vector.broadcast %cst_48 : f32 to vector<4x64xf32>
    %136 = arith.maximumf %134, %135 : vector<4x64xf32>
    %c0_49 = arith.constant 0 : index
    %c0_50 = arith.constant 0 : index
    %137 = vector.load %arg13[%c0_49, %c0_50] : memref<64x32xbf16, #tpu.memory_space<vmem>>, vector<64x32xbf16>
    %138 = arith.truncf %136 : vector<4x64xf32> to vector<4x64xbf16>
    %cst_51 = arith.constant dense<0.000000e+00> : vector<4x32xf32>
    %139 = tpu.matmul %138, %137, %cst_51 {dimension_numbers = #tpu.dot_dimension_numbers<[1], [0], [0], [1], [0, 0, 1, 1], [], []>} : vector<4x64xbf16>, vector<64x32xbf16>, vector<4x32xf32> -> vector<4x32xf32>
    %c0_52 = arith.constant 0 : index
    %c0_53 = arith.constant 0 : index
    %140 = vector.load %arg14[%c0_52, %c0_53] : memref<1x32xf32, #tpu.memory_space<vmem>>, vector<1x32xf32>
    %141 = vector.broadcast %140 : vector<1x32xf32> to vector<4x32xf32>
    %142 = arith.addf %139, %141 : vector<4x32xf32>
    %143 = arith.mulf %142, %142 : vector<4x32xf32>
    %cst_54 = arith.constant dense<0.000000e+00> : vector<4xf32>
    %144 = vector.multi_reduction <add>, %143, %cst_54 [1] : vector<4x32xf32> to vector<4xf32>
    %145 = vector.shape_cast %144 : vector<4xf32> to vector<4x1xf32>
    %146 = math.sqrt %145 : vector<4x1xf32>
    %cst_55 = arith.constant 9.99999996E-13 : f32
    %147 = vector.broadcast %cst_55 : f32 to vector<4x1xf32>
    %148 = arith.maximumf %146, %147 : vector<4x1xf32>
    %149 = vector.broadcast %148 : vector<4x1xf32> to vector<4x32xf32>
    %150 = arith.divf %142, %149 : vector<4x32xf32>
    %151 = arith.mulf %77, %77 : vector<4x32xf32>
    %cst_56 = arith.constant dense<0.000000e+00> : vector<4xf32>
    %152 = vector.multi_reduction <add>, %151, %cst_56 [1] : vector<4x32xf32> to vector<4xf32>
    %153 = vector.shape_cast %152 : vector<4xf32> to vector<4x1xf32>
    %154 = math.sqrt %153 : vector<4x1xf32>
    %cst_57 = arith.constant 9.99999996E-13 : f32
    %155 = vector.broadcast %cst_57 : f32 to vector<4x1xf32>
    %156 = arith.maximumf %154, %155 : vector<4x1xf32>
    %157 = vector.broadcast %156 : vector<4x1xf32> to vector<4x32xf32>
    %158 = arith.divf %77, %157 : vector<4x32xf32>
    %cst_58 = arith.constant dense<0.000000e+00> : vector<4x4xf32>
    %159 = tpu.matmul %150, %158, %cst_58 {dimension_numbers = #tpu.dot_dimension_numbers<[1], [1], [0], [0], [0, 0, 1, 0], [], []>} : vector<4x32xf32>, vector<4x32xf32>, vector<4x4xf32> -> vector<4x4xf32>
    %160 = tpu.iota {dimensions = array<i32: 0>} : vector<4x4xi32>
    %161 = tpu.iota {dimensions = array<i32: 1>} : vector<4x4xi32>
    %162 = arith.subi %160, %161 : vector<4x4xi32>
    %c2_i32_59 = arith.constant 2 : i32
    %163 = vector.broadcast %c2_i32_59 : i32 to vector<4x4xi32>
    %164 = arith.cmpi eq, %162, %163 : vector<4x4xi32>
    %165 = arith.subi %161, %160 : vector<4x4xi32>
    %c2_i32_60 = arith.constant 2 : i32
    %166 = vector.broadcast %c2_i32_60 : i32 to vector<4x4xi32>
    %167 = arith.cmpi eq, %165, %166 : vector<4x4xi32>
    %168 = arith.ori %164, %167 : vector<4x4xi1>
    %169 = arith.extui %168 : vector<4x4xi1> to vector<4x4xi32>
    %170 = arith.sitofp %169 : vector<4x4xi32> to vector<4x4xf32>
    %171 = arith.mulf %159, %170 : vector<4x4xf32>
    %cst_61 = arith.constant dense<0.000000e+00> : vector<4xf32>
    %172 = vector.multi_reduction <add>, %171, %cst_61 [1] : vector<4x4xf32> to vector<4xf32>
    %173 = vector.shape_cast %172 : vector<4xf32> to vector<4x1xf32>
    %cst_62 = arith.constant dense<0.000000e+00> : vector<1xf32>
    %174 = vector.multi_reduction <add>, %173, %cst_62 [0] : vector<4x1xf32> to vector<1xf32>
    %175 = vector.shape_cast %174 : vector<1xf32> to vector<1x1xf32>
    %cst_63 = arith.constant 1.000000e+00 : f32
    %176 = vector.broadcast %cst_63 : f32 to vector<1x1xf32>
    %177 = arith.mulf %176, %175 : vector<1x1xf32>
    %cst_64 = arith.constant 4.000000e+00 : f32
    %178 = vector.broadcast %cst_64 : f32 to vector<1x1xf32>
    %179 = arith.subf %178, %177 : vector<1x1xf32>
    %c0_65 = arith.constant 0 : index
    %c0_66 = arith.constant 0 : index
    %180 = vector.load %arg15[%c0_65, %c0_66] : memref<1x1xf32, #tpu.memory_space<vmem>>, vector<1x1xf32>
    tpu.vector_store %arg15[%c0_65, %c0_66], %179 {strides = array<i32>} : memref<1x1xf32, #tpu.memory_space<vmem>>, vector<1x1xf32>,
    return
  }
}

</mosaic_0001>

<llo_original>
// kernel: byol_forward.1
$region0: #{byol_forward.1}
  #allocation0 [shape = 'u32[]', space=smem, size = 0x4, offset = 0x4, fixed_abs, tag = 'smem constant byte address 0x4 - core index']
  #allocation1 [shape = 'u32[72,128]{1,0:T(1,128)}', space=vmem, size = 0x9000, scoped, tag = 'internal scratch']
  %s0 = inlined_call_operand.vmem [shape: bf16[4,768], index: 0, kind: input, shape index: {}]
  %s1 = inlined_call_operand.vmem [shape: bf16[768,32], index: 1, kind: input, shape index: {}]
  %s2 = inlined_call_operand.vmem [shape: f32[1,32], index: 2, kind: input, shape index: {}]
  %s3 = inlined_call_operand.vmem [shape: bf16[32,64], index: 3, kind: input, shape index: {}]
  %s4 = inlined_call_operand.vmem [shape: f32[1,64], index: 4, kind: input, shape index: {}]
  %s5 = inlined_call_operand.vmem [shape: f32[1,64], index: 5, kind: input, shape index: {}]
  %s6 = inlined_call_operand.vmem [shape: f32[1,64], index: 6, kind: input, shape index: {}]
  %s7 = inlined_call_operand.vmem [shape: bf16[64,32], index: 7, kind: input, shape index: {}]
  %s8 = inlined_call_operand.vmem [shape: f32[1,32], index: 8, kind: input, shape index: {}]
  %s9 = inlined_call_operand.vmem [shape: bf16[32,64], index: 9, kind: input, shape index: {}]
  %s10 = inlined_call_operand.vmem [shape: f32[1,64], index: 10, kind: input, shape index: {}]
  %s11 = inlined_call_operand.vmem [shape: f32[1,64], index: 11, kind: input, shape index: {}]
  %s12 = inlined_call_operand.vmem [shape: f32[1,64], index: 12, kind: input, shape index: {}]
  %s13 = inlined_call_operand.vmem [shape: bf16[64,32], index: 13, kind: input, shape index: {}]
  %s14 = inlined_call_operand.vmem [shape: f32[1,32], index: 14, kind: input, shape index: {}]
  %s15 = inlined_call_operand.hbm [shape: f32[1,1], index: 15, kind: output, shape index: {}]
  %s16 = sld [smem:[#allocation0]]
  $region70: #{byol_forward.1} parent=0
    _
  %s18 = ssub.s32 1, %s16
  %s19 = scalar_select 0, %s18, %s16
  $region1: #{byol_forward.1} parent=0
    #allocation2 [shape = 'u8[512]{0}', space=vmem, size = 0x400, scoped, tag = 'output window, operand 0, single buffered']
    #allocation3 [shape = 's32[1]{0}', space=sflag, size = 0x4, scoped, tag = 'scoped memory for byol_forward.1']
    %20 = vsyncpa [#allocation3], 0
    // Predicated region
    $region2: #{byol_forward.1} parent=1 // pred_check
      _
    $region3: #{byol_forward.1} parent=1 // pred_check_branch
      %22 = sbr.rel (0) target = $region5
    $region4: #{byol_forward.1} parent=1 // pred_region
      _
    $region5: #{byol_forward.1} parent=1 // pred_fallthru
      _
    // Predicated region
    $region6: #{byol_forward.1} parent=1 // pred_check
      _
    $region7: #{byol_forward.1} parent=1 // pred_check_branch
      %24 = sbr.rel (0) target = $region9
    $region8: #{byol_forward.1} parent=1 // pred_region
      _
    $region9: #{byol_forward.1} parent=1 // pred_fallthru
      _
    // Predicated region
    $region10: #{byol_forward.1} parent=1 // pred_check
      _
    $region11: #{byol_forward.1} parent=1 // pred_check_branch
      %26 = sbr.rel (0) target = $region13
    $region12: #{byol_forward.1} parent=1 // pred_region
      _
    $region13: #{byol_forward.1} parent=1 // pred_fallthru
      _
    // Predicated region
    $region14: #{byol_forward.1} parent=1 // pred_check
      _
    $region15: #{byol_forward.1} parent=1 // pred_check_branch
      %28 = sbr.rel (0) target = $region17
    $region16: #{byol_forward.1} parent=1 // pred_region
      _
    $region17: #{byol_forward.1} parent=1 // pred_fallthru
      _
    // Predicated region
    $region18: #{byol_forward.1} parent=1 // pred_check
      _
    $region19: #{byol_forward.1} parent=1 // pred_check_branch
      %30 = sbr.rel (0) target = $region21
    $region20: #{byol_forward.1} parent=1 // pred_region
      _
    $region21: #{byol_forward.1} parent=1 // pred_fallthru
      _
    // Predicated region
    $region22: #{byol_forward.1} parent=1 // pred_check
      _
    $region23: #{byol_forward.1} parent=1 // pred_check_branch
      %32 = sbr.rel (0) target = $region25
    $region24: #{byol_forward.1} parent=1 // pred_region
      _
    $region25: #{byol_forward.1} parent=1 // pred_fallthru
      _
    // Predicated region
    $region26: #{byol_forward.1} parent=1 // pred_check
      _
    $region27: #{byol_forward.1} parent=1 // pred_check_branch
      %34 = sbr.rel (0) target = $region29
    $region28: #{byol_forward.1} parent=1 // pred_region
      _
    $region29: #{byol_forward.1} parent=1 // pred_fallthru
      _
    // Predicated region
    $region30: #{byol_forward.1} parent=1 // pred_check
      _
    $region31: #{byol_forward.1} parent=1 // pred_check_branch
      %36 = sbr.rel (0) target = $region33
    $region32: #{byol_forward.1} parent=1 // pred_region
      _
    $region33: #{byol_forward.1} parent=1 // pred_fallthru
      _
    // Predicated region
    $region34: #{byol_forward.1} parent=1 // pred_check
      _
    $region35: #{byol_forward.1} parent=1 // pred_check_branch
      %38 = sbr.rel (0) target = $region37
    $region36: #{byol_forward.1} parent=1 // pred_region
      _
    $region37: #{byol_forward.1} parent=1 // pred_fallthru
      _
    // Predicated region
    $region38: #{byol_forward.1} parent=1 // pred_check
      _
    $region39: #{byol_forward.1} parent=1 // pred_check_branch
      %40 = sbr.rel (0) target = $region41
    $region40: #{byol_forward.1} parent=1 // pred_region
      _
    $region41: #{byol_forward.1} parent=1 // pred_fallthru
      _
    // Predicated region
    $region42: #{byol_forward.1} parent=1 // pred_check
      _
    $region43: #{byol_forward.1} parent=1 // pred_check_branch
      %42 = sbr.rel (0) target = $region45
    $region44: #{byol_forward.1} parent=1 // pred_region
      _
    $region45: #{byol_forward.1} parent=1 // pred_fallthru
      _
    // Predicated region
    $region46: #{byol_forward.1} parent=1 // pred_check
      _
    $region47: #{byol_forward.1} parent=1 // pred_check_branch
      %44 = sbr.rel (0) target = $region49
    $region48: #{byol_forward.1} parent=1 // pred_region
      _
    $region49: #{byol_forward.1} parent=1 // pred_fallthru
      _
    // Predicated region
    $region50: #{byol_forward.1} parent=1 // pred_check
      _
    $region51: #{byol_forward.1} parent=1 // pred_check_branch
      %46 = sbr.rel (0) target = $region53
    $region52: #{byol_forward.1} parent=1 // pred_region
      _
    $region53: #{byol_forward.1} parent=1 // pred_fallthru
      _
    // Predicated region
    $region54: #{byol_forward.1} parent=1 // pred_check
      _
    $region55: #{byol_forward.1} parent=1 // pred_check_branch
      %48 = sbr.rel (0) target = $region57
    $region56: #{byol_forward.1} parent=1 // pred_region
      _
    $region57: #{byol_forward.1} parent=1 // pred_fallthru
      _
    // Predicated region
    $region58: #{byol_forward.1} parent=1 // pred_check
      _
    $region59: #{byol_forward.1} parent=1 // pred_check_branch
      %50 = sbr.rel (0) target = $region61
    $region60: #{byol_forward.1} parent=1 // pred_region
      _
    $region61: #{byol_forward.1} parent=1 // pred_fallthru
      _
    %v52 = vlaneseq
    %v53 = vshrl.u32 %v52, 7
    %vm54 = vcmp.lt.s32.totalorder %v53, 2
    %v55 = vsel %vm54, 1, 0
    %v56 = vcvt.s32.f32 %v55
    %v57 = vsub.f32 1.0, %v56
    %v58 = vld [vmem:[%s0] sm:$0xff]
    %v59 = vld [vmem:[%s0 + $0x8] sm:$0xf]
    %v60 = vld [vmem:[%s1] sm:$0xf]
    %v61 = vld [vmem:[%s1 + $0x4] sm:$0xf]
    %v62 = vld [vmem:[%s1 + $0x8] sm:$0xf]
    %v63 = vld [vmem:[%s1 + $0xc] sm:$0xf]
    %v64 = vld [vmem:[%s1 + $0x10] sm:$0xf]
    %v65 = vld [vmem:[%s1 + $0x14] sm:$0xf]
    %v66 = vld [vmem:[%s1 + $0x18] sm:$0xf]
    %v67 = vld [vmem:[%s1 + $0x1c] sm:$0xf]
    %v68 = vld [vmem:[%s1 + $0x20] sm:$0xf]
    %v69 = vld [vmem:[%s1 + $0x24] sm:$0xf]
    %v70 = vld [vmem:[%s1 + $0x28] sm:$0xf]
    %v71 = vld [vmem:[%s1 + $0x2c] sm:$0xf]
    %v72 = vld [vmem:[%s1 + $0x30] sm:$0xf]
    %v73 = vld [vmem:[%s1 + $0x34] sm:$0xf]
    %v74 = vld [vmem:[%s1 + $0x38] sm:$0xf]
    %v75 = vld [vmem:[%s1 + $0x3c] sm:$0xf]
    %v76 = vld [vmem:[%s1 + $0x40] sm:$0xf]
    %v77 = vld [vmem:[%s1 + $0x44] sm:$0xf]
    %v78 = vld [vmem:[%s1 + $0x48] sm:$0xf]
    %v79 = vld [vmem:[%s1 + $0x4c] sm:$0xf]
    %v80 = vld [vmem:[%s1 + $0x50] sm:$0xf]
    %v81 = vld [vmem:[%s1 + $0x54] sm:$0xf]
    %v82 = vld [vmem:[%s1 + $0x58] sm:$0xf]
    %v83 = vld [vmem:[%s1 + $0x5c] sm:$0xf]
    %v84 = vld [vmem:[%s1 + $0x60] sm:$0xf]
    %v85 = vld [vmem:[%s1 + $0x64] sm:$0xf]
    %v86 = vld [vmem:[%s1 + $0x68] sm:$0xf]
    %v87 = vld [vmem:[%s1 + $0x6c] sm:$0xf]
    %v88 = vld [vmem:[%s1 + $0x70] sm:$0xf]
    %v89 = vld [vmem:[%s1 + $0x74] sm:$0xf]
    %v90 = vld [vmem:[%s1 + $0x78] sm:$0xf]
    %v91 = vld [vmem:[%s1 + $0x7c] sm:$0xf]
    %v92 = vld [vmem:[%s1 + $0x80] sm:$0xf]
    %v93 = vld [vmem:[%s1 + $0x84] sm:$0xf]
    %v94 = vld [vmem:[%s1 + $0x88] sm:$0xf]
    %v95 = vld [vmem:[%s1 + $0x8c] sm:$0xf]
    %v96 = vld [vmem:[%s1 + $0x90] sm:$0xf]
    %v97 = vld [vmem:[%s1 + $0x94] sm:$0xf]
    %v98 = vld [vmem:[%s1 + $0x98] sm:$0xf]
    %v99 = vld [vmem:[%s1 + $0x9c] sm:$0xf]
    %v100 = vld [vmem:[%s1 + $0xa0] sm:$0xf]
    %v101 = vld [vmem:[%s1 + $0xa4] sm:$0xf]
    %v102 = vld [vmem:[%s1 + $0xa8] sm:$0xf]
    %v103 = vld [vmem:[%s1 + $0xac] sm:$0xf]
    %v104 = vld [vmem:[%s1 + $0xb0] sm:$0xf]
    %v105 = vld [vmem:[%s1 + $0xb4] sm:$0xf]
    %v106 = vld [vmem:[%s1 + $0xb8] sm:$0xf]
    %v107 = vld [vmem:[%s1 + $0xbc] sm:$0xf]
    %v108 = vld [vmem:[%s1 + $0xc0] sm:$0xf]
    %v109 = vld [vmem:[%s1 + $0xc4] sm:$0xf]
    %v110 = vld [vmem:[%s1 + $0xc8] sm:$0xf]
    %v111 = vld [vmem:[%s1 + $0xcc] sm:$0xf]
    %v112 = vld [vmem:[%s1 + $0xd0] sm:$0xf]
    %v113 = vld [vmem:[%s1 + $0xd4] sm:$0xf]
    %v114 = vld [vmem:[%s1 + $0xd8] sm:$0xf]
    %v115 = vld [vmem:[%s1 + $0xdc] sm:$0xf]
    %v116 = vld [vmem:[%s1 + $0xe0] sm:$0xf]
    %v117 = vld [vmem:[%s1 + $0xe4] sm:$0xf]
    %v118 = vld [vmem:[%s1 + $0xe8] sm:$0xf]
    %v119 = vld [vmem:[%s1 + $0xec] sm:$0xf]
    %v120 = vld [vmem:[%s1 + $0xf0] sm:$0xf]
    %v121 = vld [vmem:[%s1 + $0xf4] sm:$0xf]
    %v122 = vld [vmem:[%s1 + $0xf8] sm:$0xf]
    %v123 = vld [vmem:[%s1 + $0xfc] sm:$0xf]
    %v124 = vld [vmem:[%s1 + $0x100] sm:$0xf]
    %v125 = vld [vmem:[%s1 + $0x104] sm:$0xf]
    %v126 = vld [vmem:[%s1 + $0x108] sm:$0xf]
    %v127 = vld [vmem:[%s1 + $0x10c] sm:$0xf]
    %v128 = vld [vmem:[%s1 + $0x110] sm:$0xf]
    %v129 = vld [vmem:[%s1 + $0x114] sm:$0xf]
    %v130 = vld [vmem:[%s1 + $0x118] sm:$0xf]
    %v131 = vld [vmem:[%s1 + $0x11c] sm:$0xf]
    %v132 = vld [vmem:[%s1 + $0x120] sm:$0xf]
    %v133 = vld [vmem:[%s1 + $0x124] sm:$0xf]
    %v134 = vld [vmem:[%s1 + $0x128] sm:$0xf]
    %v135 = vld [vmem:[%s1 + $0x12c] sm:$0xf]
    %v136 = vld [vmem:[%s1 + $0x130] sm:$0xf]
    %v137 = vld [vmem:[%s1 + $0x134] sm:$0xf]
    %v138 = vld [vmem:[%s1 + $0x138] sm:$0xf]
    %v139 = vld [vmem:[%s1 + $0x13c] sm:$0xf]
    %v140 = vld [vmem:[%s1 + $0x140] sm:$0xf]
    %v141 = vld [vmem:[%s1 + $0x144] sm:$0xf]
    %v142 = vld [vmem:[%s1 + $0x148] sm:$0xf]
    %v143 = vld [vmem:[%s1 + $0x14c] sm:$0xf]
    %v144 = vld [vmem:[%s1 + $0x150] sm:$0xf]
    %v145 = vld [vmem:[%s1 + $0x154] sm:$0xf]
    %v146 = vld [vmem:[%s1 + $0x158] sm:$0xf]
    %v147 = vld [vmem:[%s1 + $0x15c] sm:$0xf]
    %v148 = vld [vmem:[%s1 + $0x160] sm:$0xf]
    %v149 = vld [vmem:[%s1 + $0x164] sm:$0xf]
    %v150 = vld [vmem:[%s1 + $0x168] sm:$0xf]
    %v151 = vld [vmem:[%s1 + $0x16c] sm:$0xf]
    %v152 = vld [vmem:[%s1 + $0x170] sm:$0xf]
    %v153 = vld [vmem:[%s1 + $0x174] sm:$0xf]
    %v154 = vld [vmem:[%s1 + $0x178] sm:$0xf]
    %v155 = vld [vmem:[%s1 + $0x17c] sm:$0xf]
    %v156 = vld [vmem:[%s2] sm:$0x1]
    %v158 = vperm.slane %v156, 0
    %161 = vst [vmem:[#allocation1] ss:$4 sm:$0xff] %v58
    %s163 = scalar_lea.vmem [#allocation1], 32
    %164 = vst [vmem:[%s163] ss:$4 sm:$0xff] %v59
    %v165 = vld.sshfl [vmem:[#allocation1] sm:$0xff pattern:$0x73625140]
    %v166 = vld.sshfl [vmem:[#allocation1 + $0x8] sm:$0xff pattern:$0x73625140]
    %v167 = vld.sshfl [vmem:[#allocation1 + $0x10] sm:$0xff pattern:$0x73625140]
    %v168 = vld.sshfl [vmem:[#allocation1 + $0x18] sm:$0xff pattern:$0x73625140]
    %v169 = vld.sshfl [vmem:[#allocation1 + $0x20] sm:$0xff pattern:$0x73625140]
    %v170 = vld.sshfl [vmem:[#allocation1 + $0x28] sm:$0xff pattern:$0x73625140]
    %v273 = vunpack.c.l.b16 %v60
    %v274 = vunpack.c.l.b16 %v61
    %v275 = vunpack.c.l.b16 %v62
    %v276 = vunpack.c.l.b16 %v63
    %v277 = vunpack.c.l.b16 %v64
    %v278 = vunpack.c.l.b16 %v65
    %v279 = vunpack.c.l.b16 %v66
    %v280 = vunpack.c.l.b16 %v67
    %v281 = vunpack.c.l.b16 %v68
    %v282 = vunpack.c.l.b16 %v69
    %v283 = vunpack.c.l.b16 %v70
    %v284 = vunpack.c.l.b16 %v71
    %v285 = vunpack.c.l.b16 %v72
    %v286 = vunpack.c.l.b16 %v73
    %v287 = vunpack.c.l.b16 %v74
    %v288 = vunpack.c.l.b16 %v75
    %v289 = vunpack.c.l.b16 %v76
    %v290 = vunpack.c.l.b16 %v77
    %v291 = vunpack.c.l.b16 %v78
    %v292 = vunpack.c.l.b16 %v79
    %v293 = vunpack.c.l.b16 %v80
    %v294 = vunpack.c.l.b16 %v81
    %v295 = vunpack.c.l.b16 %v82
    %v296 = vunpack.c.l.b16 %v83
    %v297 = vunpack.c.l.b16 %v84
    %v298 = vunpack.c.l.b16 %v85
    %v299 = vunpack.c.l.b16 %v86
    %v300 = vunpack.c.l.b16 %v87
    %v301 = vunpack.c.l.b16 %v88
    %v302 = vunpack.c.l.b16 %v89
    %v303 = vunpack.c.l.b16 %v90
    %v304 = vunpack.c.l.b16 %v91
    %v305 = vunpack.c.l.b16 %v92
    %v306 = vunpack.c.l.b16 %v93
    %v307 = vunpack.c.l.b16 %v94
    %v308 = vunpack.c.l.b16 %v95
    %v309 = vunpack.c.l.b16 %v96
    %v310 = vunpack.c.l.b16 %v97
    %v311 = vunpack.c.l.b16 %v98
    %v312 = vunpack.c.l.b16 %v99
    %v313 = vunpack.c.l.b16 %v100
    %v314 = vunpack.c.l.b16 %v101
    %v315 = vunpack.c.l.b16 %v102
    %v316 = vunpack.c.l.b16 %v103
    %v317 = vunpack.c.l.b16 %v104
    %v318 = vunpack.c.l.b16 %v105
    %v319 = vunpack.c.l.b16 %v106
    %v320 = vunpack.c.l.b16 %v107
    %v321 = vunpack.c.l.b16 %v108
    %v322 = vunpack.c.l.b16 %v109
    %v323 = vunpack.c.l.b16 %v110
    %v324 = vunpack.c.l.b16 %v111
    %v325 = vunpack.c.l.b16 %v112
    %v326 = vunpack.c.l.b16 %v113
    %v327 = vunpack.c.l.b16 %v114
    %v328 = vunpack.c.l.b16 %v115
    %v329 = vunpack.c.l.b16 %v116
    %v330 = vunpack.c.l.b16 %v117
    %v331 = vunpack.c.l.b16 %v118
    %v332 = vunpack.c.l.b16 %v119
    %v333 = vunpack.c.l.b16 %v120
    %v334 = vunpack.c.l.b16 %v121
    %v335 = vunpack.c.l.b16 %v122
    %v336 = vunpack.c.l.b16 %v123
    %v337 = vunpack.c.l.b16 %v124
    %v338 = vunpack.c.l.b16 %v125
    %v339 = vunpack.c.l.b16 %v126
    %v340 = vunpack.c.l.b16 %v127
    %v341 = vunpack.c.l.b16 %v128
    %v342 = vunpack.c.l.b16 %v129
    %v343 = vunpack.c.l.b16 %v130
    %v344 = vunpack.c.l.b16 %v131
    %v345 = vunpack.c.l.b16 %v132
    %v346 = vunpack.c.l.b16 %v133
    %v347 = vunpack.c.l.b16 %v134
    %v348 = vunpack.c.l.b16 %v135
    %v349 = vunpack.c.l.b16 %v136
    %v350 = vunpack.c.l.b16 %v137
    %v351 = vunpack.c.l.b16 %v138
    %v352 = vunpack.c.l.b16 %v139
    %v353 = vunpack.c.l.b16 %v140
    %v354 = vunpack.c.l.b16 %v141
    %v355 = vunpack.c.l.b16 %v142
    %v356 = vunpack.c.l.b16 %v143
    %v357 = vunpack.c.l.b16 %v144
    %v358 = vunpack.c.l.b16 %v145
    %v359 = vunpack.c.l.b16 %v146
    %v360 = vunpack.c.l.b16 %v147
    %v361 = vunpack.c.l.b16 %v148
    %v362 = vunpack.c.l.b16 %v149
    %v363 = vunpack.c.l.b16 %v150
    %v364 = vunpack.c.l.b16 %v151
    %v365 = vunpack.c.l.b16 %v152
    %v366 = vunpack.c.l.b16 %v153
    %v367 = vunpack.c.l.b16 %v154
    %v368 = vunpack.c.l.b16 %v155
    %v369 = vpack.c.b16 %v274, %v273
    %v370 = vpack.c.b16 %v276, %v275
    %v371 = vpack.c.b16 %v278, %v277
    %v372 = vpack.c.b16 %v280, %v279
    %v373 = vpack.c.b16 %v282, %v281
    %v374 = vpack.c.b16 %v284, %v283
    %v375 = vpack.c.b16 %v286, %v285
    %v376 = vpack.c.b16 %v288, %v287
    %v377 = vpack.c.b16 %v290, %v289
    %v378 = vpack.c.b16 %v292, %v291
    %v379 = vpack.c.b16 %v294, %v293
    %v380 = vpack.c.b16 %v296, %v295
    %v381 = vpack.c.b16 %v298, %v297
    %v382 = vpack.c.b16 %v300, %v299
    %v383 = vpack.c.b16 %v302, %v301
    %v384 = vpack.c.b16 %v304, %v303
    %v385 = vpack.c.b16 %v306, %v305
    %v386 = vpack.c.b16 %v308, %v307
    %v387 = vpack.c.b16 %v310, %v309
    %v388 = vpack.c.b16 %v312, %v311
    %v389 = vpack.c.b16 %v314, %v313
    %v390 = vpack.c.b16 %v316, %v315
    %v391 = vpack.c.b16 %v318, %v317
    %v392 = vpack.c.b16 %v320, %v319
    %v393 = vpack.c.b16 %v322, %v321
    %v394 = vpack.c.b16 %v324, %v323
    %v395 = vpack.c.b16 %v326, %v325
    %v396 = vpack.c.b16 %v328, %v327
    %v397 = vpack.c.b16 %v330, %v329
    %v398 = vpack.c.b16 %v332, %v331
    %v399 = vpack.c.b16 %v334, %v333
    %v400 = vpack.c.b16 %v336, %v335
    %v401 = vpack.c.b16 %v338, %v337
    %v402 = vpack.c.b16 %v340, %v339
    %v403 = vpack.c.b16 %v342, %v341
    %v404 = vpack.c.b16 %v344, %v343
    %v405 = vpack.c.b16 %v346, %v345
    %v406 = vpack.c.b16 %v348, %v347
    %v407 = vpack.c.b16 %v350, %v349
    %v408 = vpack.c.b16 %v352, %v351
    %v409 = vpack.c.b16 %v354, %v353
    %v410 = vpack.c.b16 %v356, %v355
    %v411 = vpack.c.b16 %v358, %v357
    %v412 = vpack.c.b16 %v360, %v359
    %v413 = vpack.c.b16 %v362, %v361
    %v414 = vpack.c.b16 %v364, %v363
    %v415 = vpack.c.b16 %v366, %v365
    %v416 = vpack.c.b16 %v368, %v367
    %465 = vmatpush.bf16.msra.mxu0 %v376
    %466 = vmatpush.bf16.msra.mxu0 %v375
    %467 = vmatpush.bf16.msra.mxu0 %v374
    %468 = vmatpush.bf16.msra.mxu0 %v373
    %469 = vmatpush.bf16.msra.mxu0 %v372
    %470 = vmatpush.bf16.msra.mxu0 %v371
    %471 = vmatpush.bf16.msra.mxu0 %v370
    %472 = vmatpush.bf16.msra.mxu0 %v369
    %473 = vmatmul.bf16.gmra.mxu0 %v165
    %v474 = vpop.f32.mrf.mxu0
    %v475 = vadd.f32 %v158, %v474
    %v476 = vpop.f32.mrf.mxu0
    %477 = vdwg.mxu0
    %478 = vmatpush.bf16.msra.mxu0 %v384
    %479 = vmatpush.bf16.msra.mxu0 %v383
    %480 = vmatpush.bf16.msra.mxu0 %v382
    %481 = vmatpush.bf16.msra.mxu0 %v381
    %482 = vmatpush.bf16.msra.mxu0 %v380
    %483 = vmatpush.bf16.msra.mxu0 %v379
    %484 = vmatpush.bf16.msra.mxu0 %v378
    %485 = vmatpush.bf16.msra.mxu0 %v377
    %486 = vmatmul.bf16.gmra.mxu0 %v166
    %v487 = vpop.f32.mrf.mxu0
    %v488 = vadd.f32 %v475, %v487
    %v489 = vpop.f32.mrf.mxu0
    %490 = vdwg.mxu0
    %491 = vmatpush.bf16.msra.mxu0 %v392
    %492 = vmatpush.bf16.msra.mxu0 %v391
    %493 = vmatpush.bf16.msra.mxu0 %v390
    %494 = vmatpush.bf16.msra.mxu0 %v389
    %495 = vmatpush.bf16.msra.mxu0 %v388
    %496 = vmatpush.bf16.msra.mxu0 %v387
    %497 = vmatpush.bf16.msra.mxu0 %v386
    %498 = vmatpush.bf16.msra.mxu0 %v385
    %499 = vmatmul.bf16.gmra.mxu0 %v167
    %v500 = vpop.f32.mrf.mxu0
    %v501 = vadd.f32 %v488, %v500
    %v502 = vpop.f32.mrf.mxu0
    %503 = vdwg.mxu0
    %504 = vmatpush.bf16.msra.mxu0 %v400
    %505 = vmatpush.bf16.msra.mxu0 %v399
    %506 = vmatpush.bf16.msra.mxu0 %v398
    %507 = vmatpush.bf16.msra.mxu0 %v397
    %508 = vmatpush.bf16.msra.mxu0 %v396
    %509 = vmatpush.bf16.msra.mxu0 %v395
    %510 = vmatpush.bf16.msra.mxu0 %v394
    %511 = vmatpush.bf16.msra.mxu0 %v393
    %512 = vmatmul.bf16.gmra.mxu0 %v168
    %v513 = vpop.f32.mrf.mxu0
    %v514 = vadd.f32 %v501, %v513
    %v515 = vpop.f32.mrf.mxu0
    %516 = vdwg.mxu0
    %517 = vmatpush.bf16.msra.mxu0 %v408
    %518 = vmatpush.bf16.msra.mxu0 %v407
    %519 = vmatpush.bf16.msra.mxu0 %v406
    %520 = vmatpush.bf16.msra.mxu0 %v405
    %521 = vmatpush.bf16.msra.mxu0 %v404
    %522 = vmatpush.bf16.msra.mxu0 %v403
    %523 = vmatpush.bf16.msra.mxu0 %v402
    %524 = vmatpush.bf16.msra.mxu0 %v401
    %525 = vmatmul.bf16.gmra.mxu0 %v169
    %v526 = vpop.f32.mrf.mxu0
    %v527 = vadd.f32 %v514, %v526
    %v528 = vpop.f32.mrf.mxu0
    %529 = vdwg.mxu0
    %530 = vmatpush.bf16.msra.mxu0 %v416
    %531 = vmatpush.bf16.msra.mxu0 %v415
    %532 = vmatpush.bf16.msra.mxu0 %v414
    %533 = vmatpush.bf16.msra.mxu0 %v413
    %534 = vmatpush.bf16.msra.mxu0 %v412
    %535 = vmatpush.bf16.msra.mxu0 %v411
    %536 = vmatpush.bf16.msra.mxu0 %v410
    %537 = vmatpush.bf16.msra.mxu0 %v409
    %538 = vmatmul.bf16.gmra.mxu0 %v170
    %v539 = vpop.f32.mrf.mxu0
    %v540 = vadd.f32 %v527, %v539
    %v541 = vpop.f32.mrf.mxu0
    %542 = vdwg.mxu0
    %v543 = vld [vmem:[%s3] sm:$0xf]
    %v544 = vld [vmem:[%s3 + $0x4] sm:$0xf]
    %v545 = vld [vmem:[%s3 + $0x8] sm:$0xf]
    %v546 = vld [vmem:[%s3 + $0xc] sm:$0xf]
    %v547 = vpack.c.bf16 %v540, %v540
    %v548 = vld [vmem:[%s4] sm:$0x1]
    %v550 = vperm.slane %v548, 0
    %v556 = vunpack.c.l.b16 %v543
    %v557 = vunpack.c.l.b16 %v544
    %v558 = vunpack.c.l.b16 %v545
    %v559 = vunpack.c.l.b16 %v546
    %v560 = vpack.c.b16 %v557, %v556
    %v561 = vpack.c.b16 %v559, %v558
    %vm564 = vcmask 261120
    %v566 = vsel %vm564, %v547, 0
    %568 = vmatpush.bf16.msra.mxu0 0
    %569 = vmatpush.bf16.msra.mxu0 0
    %570 = vmatpush.bf16.msra.mxu0 0
    %571 = vmatpush.bf16.msra.mxu0 0
    %572 = vmatpush.bf16.msra.mxu0 0
    %573 = vmatpush.bf16.msra.mxu0 0
    %574 = vmatpush.bf16.msra.mxu0 %v561
    %575 = vmatpush.bf16.msra.mxu0 %v560
    %576 = vmatmul.bf16.gmra.mxu0 %v566
    %v577 = vpop.f32.mrf.mxu0
    %v578 = vadd.f32 %v550, %v577
    %v579 = vpop.f32.mrf.mxu0
    %580 = vdwg.mxu0
    %v581 = vld [vmem:[%s5] sm:$0x1]
    %v582 = vld [vmem:[%s6] sm:$0x1]
    %v583 = vmul.f32 %v578, %v56
    %vm584 = vcmask 519168
    %v585 = vsel %vm584, %v583, 0.0
    %v586 = vrot.slane %v585, 4
    %v587 = vadd.f32 %v585, %v586
    %v588 = vrot.slane %v587, 2
    %v589 = vadd.f32 %v587, %v588
    %v590 = vrot.slane %v589, 1
    %v591 = vadd.f32 %v589, %v590
    %v592 = vmul.f32 %v591, 0.5
    %v593 = vmul.f32 %v578, %v57
    %v594 = vsel %vm584, %v593, 0.0
    %v595 = vrot.slane %v594, 4
    %v596 = vadd.f32 %v594, %v595
    %v597 = vrot.slane %v596, 2
    %v598 = vadd.f32 %v596, %v597
    %v599 = vrot.slane %v598, 1
    %v600 = vadd.f32 %v598, %v599
    %v601 = vmul.f32 %v600, 0.5
    %v602 = vmul.f32 %v56, %v592
    %v603 = vmul.f32 %v57, %v601
    %v604 = vadd.f32 %v602, %v603
    %v605 = vsub.f32 %v578, %v604
    %v606 = vmul.f32 %v605, %v605
    %v607 = vmul.f32 %v606, %v56
    %v608 = vsel %vm584, %v607, 0.0
    %v609 = vrot.slane %v608, 4
    %v610 = vadd.f32 %v608, %v609
    %v611 = vrot.slane %v610, 2
    %v612 = vadd.f32 %v610, %v611
    %v613 = vrot.slane %v612, 1
    %v614 = vadd.f32 %v612, %v613
    %v615 = vmul.f32 %v614, 0.5
    %v616 = vmul.f32 %v606, %v57
    %v617 = vsel %vm584, %v616, 0.0
    %v618 = vrot.slane %v617, 4
    %v619 = vadd.f32 %v617, %v618
    %v620 = vrot.slane %v619, 2
    %v621 = vadd.f32 %v619, %v620
    %v622 = vrot.slane %v621, 1
    %v623 = vadd.f32 %v621, %v622
    %v624 = vmul.f32 %v623, 0.5
    %v625 = vmul.f32 %v56, %v615
    %v626 = vmul.f32 %v57, %v624
    %v627 = vadd.f32 %v625, %v626
    %v628 = vadd.f32 %v627, 1e-05
    %v629 = vrsqrt.pop %v628
    %v630 = vmul.f32 %v629, %v628
    %v631 = vmul.f32 %v630, %v629
    %v632 = vmul.f32 0.5, %v631
    %v633 = vsub.f32 1.5, %v632
    %v634 = vmul.f32 %v629, %v633
    %vm635 = vweird.f32 %v628
    %vm636 = vweird.f32 %v629
    %vm637 = vmor %vm635, %vm636
    %v638 = vsel %vm637, %v629, %v634
    %v639 = vmul.f32 %v605, %v638
    %v641 = vperm.slane %v581, 0
    %v643 = vmul.f32 %v639, %v641
    %v645 = vperm.slane %v582, 0
    %v647 = vadd.f32 %v643, %v645
    %v648 = vmax.f32 %v647, 0.0
    %v649 = vld [vmem:[%s7] sm:$0xf]
    %v650 = vld [vmem:[%s7 + $0x4] sm:$0xf]
    %v651 = vld [vmem:[%s7 + $0x8] sm:$0xf]
    %v652 = vld [vmem:[%s7 + $0xc] sm:$0xf]
    %v653 = vld [vmem:[%s7 + $0x10] sm:$0xf]
    %v654 = vld [vmem:[%s7 + $0x14] sm:$0xf]
    %v655 = vld [vmem:[%s7 + $0x18] sm:$0xf]
    %v656 = vld [vmem:[%s7 + $0x1c] sm:$0xf]
    %v657 = vpack.c.bf16 %v648, %v648
    %v658 = vld [vmem:[%s8] sm:$0x1]
    %v660 = vperm.slane %v658, 0
    %v670 = vunpack.c.l.b16 %v649
    %v671 = vunpack.c.l.b16 %v650
    %v672 = vunpack.c.l.b16 %v651
    %v673 = vunpack.c.l.b16 %v652
    %v674 = vunpack.c.l.b16 %v653
    %v675 = vunpack.c.l.b16 %v654
    %v676 = vunpack.c.l.b16 %v655
    %v677 = vunpack.c.l.b16 %v656
    %v678 = vpack.c.b16 %v671, %v670
    %v679 = vpack.c.b16 %v673, %v672
    %v680 = vpack.c.b16 %v675, %v674
    %v681 = vpack.c.b16 %v677, %v676
    %vm686 = vcmask 523264
    %v688 = vsel %vm686, %v657, 0
    %690 = vmatpush.bf16.msra.mxu0 0
    %691 = vmatpush.bf16.msra.mxu0 0
    %692 = vmatpush.bf16.msra.mxu0 0
    %693 = vmatpush.bf16.msra.mxu0 0
    %694 = vmatpush.bf16.msra.mxu0 %v681
    %695 = vmatpush.bf16.msra.mxu0 %v680
    %696 = vmatpush.bf16.msra.mxu0 %v679
    %697 = vmatpush.bf16.msra.mxu0 %v678
    %698 = vmatmul.bf16.gmra.mxu0 %v688
    %v699 = vpop.f32.mrf.mxu0
    %v700 = vadd.f32 %v660, %v699
    %v701 = vpop.f32.mrf.mxu0
    %702 = vdwg.mxu0
    %v703 = vld [vmem:[%s9] sm:$0xf]
    %v704 = vld [vmem:[%s9 + $0x4] sm:$0xf]
    %v705 = vld [vmem:[%s9 + $0x8] sm:$0xf]
    %v706 = vld [vmem:[%s9 + $0xc] sm:$0xf]
    %v707 = vpack.c.bf16 %v700, %v700
    %v708 = vld [vmem:[%s10] sm:$0x1]
    %v710 = vperm.slane %v708, 0
    %v716 = vunpack.c.l.b16 %v703
    %v717 = vunpack.c.l.b16 %v704
    %v718 = vunpack.c.l.b16 %v705
    %v719 = vunpack.c.l.b16 %v706
    %v720 = vpack.c.b16 %v717, %v716
    %v721 = vpack.c.b16 %v719, %v718
    %v725 = vsel %vm564, %v707, 0
    %727 = vmatpush.bf16.msra.mxu0 0
    %728 = vmatpush.bf16.msra.mxu0 0
    %729 = vmatpush.bf16.msra.mxu0 0
    %730 = vmatpush.bf16.msra.mxu0 0
    %731 = vmatpush.bf16.msra.mxu0 0
    %732 = vmatpush.bf16.msra.mxu0 0
    %733 = vmatpush.bf16.msra.mxu0 %v721
    %734 = vmatpush.bf16.msra.mxu0 %v720
    %735 = vmatmul.bf16.gmra.mxu0 %v725
    %v736 = vpop.f32.mrf.mxu0
    %v737 = vadd.f32 %v710, %v736
    %v738 = vpop.f32.mrf.mxu0
    %739 = vdwg.mxu0
    %v740 = vld [vmem:[%s11] sm:$0x1]
    %v741 = vld [vmem:[%s12] sm:$0x1]
    %v742 = vmul.f32 %v737, %v56
    %v743 = vsel %vm584, %v742, 0.0
    %v744 = vrot.slane %v743, 4
    %v745 = vadd.f32 %v743, %v744
    %v746 = vrot.slane %v745, 2
    %v747 = vadd.f32 %v745, %v746
    %v748 = vrot.slane %v747, 1
    %v749 = vadd.f32 %v747, %v748
    %v750 = vmul.f32 %v749, 0.5
    %v751 = vmul.f32 %v737, %v57
    %v752 = vsel %vm584, %v751, 0.0
    %v753 = vrot.slane %v752, 4
    %v754 = vadd.f32 %v752, %v753
    %v755 = vrot.slane %v754, 2
    %v756 = vadd.f32 %v754, %v755
    %v757 = vrot.slane %v756, 1
    %v758 = vadd.f32 %v756, %v757
    %v759 = vmul.f32 %v758, 0.5
    %v760 = vmul.f32 %v56, %v750
    %v761 = vmul.f32 %v57, %v759
    %v762 = vadd.f32 %v760, %v761
    %v763 = vsub.f32 %v737, %v762
    %v764 = vmul.f32 %v763, %v763
    %v765 = vmul.f32 %v764, %v56
    %v766 = vsel %vm584, %v765, 0.0
    %v767 = vrot.slane %v766, 4
    %v768 = vadd.f32 %v766, %v767
    %v769 = vrot.slane %v768, 2
    %v770 = vadd.f32 %v768, %v769
    %v771 = vrot.slane %v770, 1
    %v772 = vadd.f32 %v770, %v771
    %v773 = vmul.f32 %v772, 0.5
    %v774 = vmul.f32 %v764, %v57
    %v775 = vsel %vm584, %v774, 0.0
    %v776 = vrot.slane %v775, 4
    %v777 = vadd.f32 %v775, %v776
    %v778 = vrot.slane %v777, 2
    %v779 = vadd.f32 %v777, %v778
    %v780 = vrot.slane %v779, 1
    %v781 = vadd.f32 %v779, %v780
    %v782 = vmul.f32 %v781, 0.5
    %v783 = vmul.f32 %v56, %v773
    %v784 = vmul.f32 %v57, %v782
    %v785 = vadd.f32 %v783, %v784
    %v786 = vadd.f32 %v785, 1e-05
    %v787 = vrsqrt.pop %v786
    %v788 = vmul.f32 %v787, %v786
    %v789 = vmul.f32 %v788, %v787
    %v790 = vmul.f32 0.5, %v789
    %v791 = vsub.f32 1.5, %v790
    %v792 = vmul.f32 %v787, %v791
    %vm793 = vweird.f32 %v786
    %vm794 = vweird.f32 %v787
    %vm795 = vmor %vm793, %vm794
    %v796 = vsel %vm795, %v787, %v792
    %v797 = vmul.f32 %v763, %v796
    %v799 = vperm.slane %v740, 0
    %v801 = vmul.f32 %v797, %v799
    %v803 = vperm.slane %v741, 0
    %v805 = vadd.f32 %v801, %v803
    %v806 = vmax.f32 %v805, 0.0
    %v807 = vld [vmem:[%s13] sm:$0xf]
    %v808 = vld [vmem:[%s13 + $0x4] sm:$0xf]
    %v809 = vld [vmem:[%s13 + $0x8] sm:$0xf]
    %v810 = vld [vmem:[%s13 + $0xc] sm:$0xf]
    %v811 = vld [vmem:[%s13 + $0x10] sm:$0xf]
    %v812 = vld [vmem:[%s13 + $0x14] sm:$0xf]
    %v813 = vld [vmem:[%s13 + $0x18] sm:$0xf]
    %v814 = vld [vmem:[%s13 + $0x1c] sm:$0xf]
    %v815 = vpack.c.bf16 %v806, %v806
    %v816 = vld [vmem:[%s14] sm:$0x1]
    %v818 = vperm.slane %v816, 0
    %v828 = vunpack.c.l.b16 %v807
    %v829 = vunpack.c.l.b16 %v808
    %v830 = vunpack.c.l.b16 %v809
    %v831 = vunpack.c.l.b16 %v810
    %v832 = vunpack.c.l.b16 %v811
    %v833 = vunpack.c.l.b16 %v812
    %v834 = vunpack.c.l.b16 %v813
    %v835 = vunpack.c.l.b16 %v814
    %v836 = vpack.c.b16 %v829, %v828
    %v837 = vpack.c.b16 %v831, %v830
    %v838 = vpack.c.b16 %v833, %v832
    %v839 = vpack.c.b16 %v835, %v834
    %v845 = vsel %vm686, %v815, 0
    %847 = vmatpush.bf16.msra.mxu0 0
    %848 = vmatpush.bf16.msra.mxu0 0
    %849 = vmatpush.bf16.msra.mxu0 0
    %850 = vmatpush.bf16.msra.mxu0 0
    %851 = vmatpush.bf16.msra.mxu0 %v839
    %852 = vmatpush.bf16.msra.mxu0 %v838
    %853 = vmatpush.bf16.msra.mxu0 %v837
    %854 = vmatpush.bf16.msra.mxu0 %v836
    %855 = vmatmul.bf16.gmra.mxu0 %v845
    %v856 = vpop.f32.mrf.mxu0
    %v857 = vadd.f32 %v818, %v856
    %v858 = vpop.f32.mrf.mxu0
    %859 = vdwg.mxu0
    %v860 = vmul.f32 %v857, %v857
    %vm861 = vcmask 257024
    %v862 = vsel %vm861, %v860, 0.0
    %863 = vadd.xlane.f32.xlu0 %v862
    %v864 = vpop.xlane.xlu0 %863
    %v865 = vrsqrt.pop %v864
    %v866 = vmul.f32 %v865, %v864
    %v867 = vmul.f32 %v866, %v865
    %v868 = vmul.f32 0.5, %v867
    %v869 = vsub.f32 1.5, %v868
    %v870 = vmul.f32 %v865, %v869
    %v871 = vmul.f32 %v864, %v870
    %vm872 = vcmp.eq.f32.partialorder %v864, inf
    %v873 = vsel %vm872, %v864, %v871
    %vm874 = vcmp.eq.f32.partialorder %v864, 0.0
    %v875 = vand.u32 %v864, 2147483648
    %v876 = vsel %vm874, %v875, %v873
    %v877 = vmax.f32 %v876, 1e-12
    %v878 = vrcp.pop %v877
    %v879 = vmul.f32 %v877, %v878
    %v880 = vsub.f32 1.0, %v879
    %v881 = vmul.f32 %v878, %v880
    %v882 = vadd.f32 %v878, %v881
    %vm883 = vweird.f32 %v877
    %vm884 = vweird.f32 %v878
    %vm885 = vmor %vm883, %vm884
    %v886 = vsel %vm885, %v878, %v882
    %v887 = vand.u32 2147483647, %v877
    %vm888 = vcmp.eq.f32.partialorder %v887, 8.507059e+37
    %v889 = vand.u32 %v877, 2147483648
    %v890 = vor.u32 1.1754944e-38, %v889
    %v891 = vsel %vm888, %v890, %v886
    %v892 = vmul.f32 %v857, %v891
    %v893 = vmul.f32 %v700, %v700
    %v894 = vsel %vm861, %v893, 0.0
    %895 = vadd.xlane.f32.xlu0 %v894
    %v896 = vpop.xlane.xlu0 %895
    %v897 = vrsqrt.pop %v896
    %v898 = vmul.f32 %v897, %v896
    %v899 = vmul.f32 %v898, %v897
    %v900 = vmul.f32 0.5, %v899
    %v901 = vsub.f32 1.5, %v900
    %v902 = vmul.f32 %v897, %v901
    %v903 = vmul.f32 %v896, %v902
    %vm904 = vcmp.eq.f32.partialorder %v896, inf
    %v905 = vsel %vm904, %v896, %v903
    %vm906 = vcmp.eq.f32.partialorder %v896, 0.0
    %v907 = vand.u32 %v896, 2147483648
    %v908 = vsel %vm906, %v907, %v905
    %v909 = vmax.f32 %v908, 1e-12
    %v910 = vrcp.pop %v909
    %v911 = vmul.f32 %v909, %v910
    %v912 = vsub.f32 1.0, %v911
    %v913 = vmul.f32 %v910, %v912
    %v914 = vadd.f32 %v910, %v913
    %vm915 = vweird.f32 %v909
    %vm916 = vweird.f32 %v910
    %vm917 = vmor %vm915, %vm916
    %v918 = vsel %vm917, %v910, %v914
    %v919 = vand.u32 2147483647, %v909
    %vm920 = vcmp.eq.f32.partialorder %v919, 8.507059e+37
    %v921 = vand.u32 %v909, 2147483648
    %v922 = vor.u32 1.1754944e-38, %v921
    %v923 = vsel %vm920, %v922, %v918
    %v924 = vmul.f32 %v700, %v923
    %v926 = vsel %vm564, %v892, 0
    %v929 = vsel %vm564, %v924, 0
    %931 = vmatpush.xpose.msra.mxu0 0.0
    %932 = vmatpush.xpose.msra.mxu0 0.0
    %933 = vmatpush.xpose.msra.mxu0 0.0
    %934 = vmatpush.xpose.msra.mxu0 0.0
    %935 = vmatpush.xpose.msra.mxu0 0.0
    %936 = vmatpush.xpose.msra.mxu0 0.0
    %937 = vmatpush.xpose.msra.mxu0 0.0
    %938 = vmatpush.xpose.msra.mxu0 0.0
    %939 = vmatpush.xpose.msra.mxu0 0.0
    %940 = vmatpush.xpose.msra.mxu0 0.0
    %941 = vmatpush.xpose.msra.mxu0 0.0
    %942 = vmatpush.xpose.msra.mxu0 0.0
    %943 = vmatpush.xpose.msra.mxu0 0.0
    %944 = vmatpush.xpose.msra.mxu0 0.0
    %945 = vmatpush.xpose.msra.mxu0 0.0
    %946 = vmatpush.xpose.msra.mxu0 %v929
    %947 = vmatmul.f32.gmra.mxu0 %v926
    %v948 = vpop.f32.mrf.mxu0
    %v949 = vadd.f32 0.0, %v948
    %950 = vdwg.mxu0
    %v951 = vlaneseq
    %v952 = vand.u32 %v951, 127
    %v953 = vsub.s32 %v53, %v952
    %vm954 = vcmp.eq.s32.totalorder %v953, 2
    %v955 = vsub.s32 %v952, %v53
    %vm956 = vcmp.eq.s32.totalorder %v955, 2
    %vm957 = vmor %vm954, %vm956
    %v958 = vsel %vm957, 1, 0
    %v959 = vcvt.s32.f32 %v958
    %v960 = vmul.f32 %v949, %v959
    %vm961 = vcmask 27648
    %v962 = vsel %vm961, %v960, 0.0
    %963 = vadd.xlane.f32.xlu0 %v962
    %v964 = vpop.xlane.xlu0 %963
    %vm965 = vcmask 1043456
    %v966 = vsel %vm965, %v964, 0.0
    %v967 = vrot.slane %v966, 4
    %v968 = vadd.f32 %v966, %v967
    %v969 = vrot.slane %v968, 2
    %v970 = vadd.f32 %v968, %v969
    %v971 = vrot.slane %v970, 1
    %v972 = vadd.f32 %v970, %v971
    %v973 = vsub.f32 4.0, %v972
    %vm974 = vcmask 0
    %975 = vst.msk [vmem:[#allocation2] sm:$0x1] %vm974, %v973
    // Predicated region
    $region62: #{byol_forward.1} parent=1 // pred_check
      _
    $region63: #{byol_forward.1} parent=1 // pred_check_branch
      %977 = sbr.rel (0) target = $region65
    $region64: #{byol_forward.1} parent=1 // pred_region
      %979 = vsyncadd [#allocation3], 0
      %s981 = sshll.u32 [#allocation2], 4
      %s982 = int_to_ptr.vmem [resolvable:$true] %s981
      %s983 = sshll.u32 %s15, 4
      %s984 = int_to_ptr.hbm [resolvable:$true] %s983
      %986 = dma.vmem_to_hbm [thread:$0]  %s982, 16, %s984, [#allocation3]
    $region65: #{byol_forward.1} parent=1 // pred_fallthru
      _
    // Predicated region
    $region66: #{byol_forward.1} parent=1 // pred_check
      _
    $region67: #{byol_forward.1} parent=1 // pred_check_branch
      %988 = sbr.rel (0) target = $region69
    $region68: #{byol_forward.1} parent=1 // pred_region
      %990 = dma.done [#allocation3], 16
    $region69: #{byol_forward.1} parent=1 // pred_fallthru
      _
    %991 = vsyncpa [#allocation3], 1

</llo_original>
